<compile_context>
chip_gen: v6e
topology: v6e:2x2x1
jax: 0.10.0
libtpu: 0.0.40
codegen_flags: <defaults>
</compile_context>

<pallas_src>
import jax
import jax.numpy as jnp
from jax.experimental import pallas as pl
from jax.experimental.pallas import tpu as pltpu


def _round_up(x, m):
    return ((x + m - 1) // m) * m


_SUB_ROWS = 2048  # in-kernel sub-block size: bounds h1/h2 temporaries for any TILE_B


def _vmem_limit_bytes():
    """Scoped-VMEM limit to request: ~75% of physical VMEM (fallback: v7x 64 MiB)."""
    cap = 64 << 20
    try:
        info = pltpu.get_tpu_info()
        cap = int(getattr(info, "vmem_capacity_bytes", cap) or cap)
    except Exception:
        pass
    return (cap * 3) // 4


def _choose_tiling(B, F, x_itemsize, max_tile_b, vmem_limit_bytes):
    """Pick (TILE_B, SUB_B): VMEM-budgeted, 128-aligned, power-of-two bucketed."""
    lane_f = _round_up(max(F, 1), 128)            # x rows are lane-padded in VMEM
    row_bytes = 2 * lane_f * x_itemsize           # double-buffered x row
    budget_rows = max(128, (vmem_limit_bytes // 2) // row_bytes)
    tile_cap = min(int(max_tile_b), int(budget_rows))
    if tile_cap >= _SUB_ROWS:
        tile_cap = (tile_cap // _SUB_ROWS) * _SUB_ROWS
    else:
        tile_cap = max(128, (tile_cap // 128) * 128)

    # Bucket B into power-of-two groups of 128 rows -> few distinct compiles.
    bucket = 128 * int(pl.next_power_of_2(int(pl.cdiv(B, 128))))
    tile_b = min(tile_cap, bucket)
    sub_b = min(_SUB_ROWS, tile_b)

    # Keep >=2 grid steps for big-enough batches so both v7x TensorCores get work.
    if pl.cdiv(B, tile_b) < 2 and B > sub_b and tile_b >= 2 * sub_b:
        tile_b = max(sub_b, ((tile_b // 2) // sub_b) * sub_b)
    return tile_b, sub_b


def _make_value_kernel(tile_b, sub_b, compute_dtype):
    n_sub = tile_b // sub_b

    def kernel(x_ref, w1_ref, b1_ref, w2_ref, b2_ref, w3_ref, b3_ref, out_ref):
        # Weights/biases are VMEM-resident across grid steps (constant index maps).
        w1 = w1_ref[...]
        w2 = w2_ref[...]
        b1 = b1_ref[...]                              # (1, H1) f32
        b2 = b2_ref[...]                              # (1, H2) f32
        w3_row = w3_ref[...].astype(jnp.float32)      # (1, H2)
        b3 = b3_ref[0, 0]                             # SMEM scalar

        def sub_block(s, carry):
            off = pl.multiple_of(s * sub_b, sub_b)
            xs = x_ref[pl.ds(off, sub_b), :].astype(compute_dtype)
            # fc1 + ReLU (MXU matmul, f32 accumulate; bias/ReLU in f32 -> v5e-safe)
            h1 = jnp.dot(xs, w1, preferred_element_type=jnp.float32)
            h1 = jnp.maximum(h1 + b1, 0.0)
            # fc2 + ReLU
            h2 = jnp.dot(h1.astype(compute_dtype), w2, preferred_element_type=jnp.float32)
            h2 = jnp.maximum(h2 + b2, 0.0)
            # fc3 (out_features == 1): VPU multiply + lane reduce (no padded N=1 matmul)
            v = jnp.sum(h2 * w3_row, axis=-1) + b3    # (sub_b,)
            out_ref[:, pl.ds(off, sub_b)] = v[None, :].astype(out_ref.dtype)
            return carry

        if n_sub == 1:
            sub_block(0, None)
        else:
            jax.lax.fori_loop(0, n_sub, sub_block, None, unroll=True)

    return kernel


def value_network_forward(x, params, *, max_tile_b=32768, compute_dtype=jnp.float32):
    """x: [B, F] or [F]; params: w1[F,H1], b1[1,H1], w2[H1,H2], b2[1,H2], w3[H2,1], b3[1,1].

    `compute_dtype` controls the MXU input dtype of the two matmuls (activations are
    cast in-kernel; supply x already in bf16 to also halve the HBM read of x).
    """
    w1, b1, w2, b2, w3, b3 = (params["w1"], params["b1"], params["w2"],
                              params["b2"], params["w3"], params["b3"])
    in_features = w1.shape[0]

    # Mirror PyTorch's ndim handling.
    if x.ndim == 1 and x.shape[0] == in_features:
        x = x[None, :]
    elif x.ndim == 2 and x.shape[1] != in_features:
        raise ValueError(
            f"ValueNetwork input feature mismatch. Expected {in_features}, got {x.shape[1]}")

    B, F = x.shape
    H1 = w1.shape[1]
    H2 = w2.shape[1]

    vmem_limit = int(_vmem_limit_bytes())
    x_itemsize = jnp.dtype(x.dtype).itemsize
    TILE_B, SUB_B = _choose_tiling(B, F, x_itemsize, max_tile_b, vmem_limit)
    num_tiles = int(pl.cdiv(B, TILE_B))

    # No wrapper-side pad/astype of x (no extra HBM pass over x): the ragged last
    # tile uses Pallas block-boundary clipping; garbage rows are sliced off below.
    w1_c = w1.astype(compute_dtype)
    w2_c = w2.astype(compute_dtype)
    w3_row = w3.reshape(1, H2).astype(jnp.float32)
    b1_v = b1.reshape(1, H1).astype(jnp.float32)
    b2_v = b2.reshape(1, H2).astype(jnp.float32)
    b3_s = b3.reshape(1, 1).astype(jnp.float32)

    w_itemsize = jnp.dtype(compute_dtype).itemsize
    flops = 2 * B * (F * H1 + H1 * H2 + H2)
    bytes_accessed = (B * F * x_itemsize                       # x (dominant)
                      + (F * H1 + H1 * H2) * w_itemsize        # weights
                      + (H1 + 2 * H2 + 1) * 4                  # biases + w3 row
                      + num_tiles * TILE_B * 4)                # output slab
    cost = pl.CostEstimate(flops=flops, transcendentals=0, bytes_accessed=bytes_accessed)

    kernel = _make_value_kernel(TILE_B, SUB_B, compute_dtype)

    out = pl.pallas_call(
        kernel,
        out_shape=jax.ShapeDtypeStruct((num_tiles, TILE_B), jnp.float32),
        grid=(num_tiles,),
        in_specs=[
            pl.BlockSpec((TILE_B, F), lambda i: (i, 0)),        # x tile (pipelined)
            pl.BlockSpec((F, H1), lambda i: (0, 0)),            # w1 (VMEM-resident)
            pl.BlockSpec((1, H1), lambda i: (0, 0)),            # b1
            pl.BlockSpec((H1, H2), lambda i: (0, 0)),           # w2
            pl.BlockSpec((1, H2), lambda i: (0, 0)),            # b2
            pl.BlockSpec((1, H2), lambda i: (0, 0)),            # w3 row
            pl.BlockSpec(memory_space=pltpu.MemorySpace.SMEM),  # b3 scalar
        ],
        out_specs=pl.BlockSpec((1, TILE_B), lambda i: (i, 0)),  # lane-dense value row
        compiler_params=pltpu.CompilerParams(
            dimension_semantics=("parallel",),   # batch axis shardable across TCs (v7x)
            vmem_limit_bytes=vmem_limit,
        ),
        cost_estimate=cost,
    )(x, w1_c, b1_v, w2_c, b2_v, w3_row, b3_s)

    # Lane-dense slab -> (B, 1), dropping any rows past the true batch.
    return out.reshape(-1)[:B].reshape(B, 1)


def init_params(key, num_global_state_features, hidden_dim1=64, hidden_dim2=32):
    """Deterministic synthetic init (uniform, PyTorch-Linear-like bounds)."""
    ks = jax.random.split(key, 6)

    def linear(kw, kb, fan_in, fan_out):
        bound = 1.0 / jnp.sqrt(fan_in)
        # stored as [in, out] (transpose of PyTorch's [out, in])
        w = jax.random.uniform(kw, (fan_in, fan_out), jnp.float32, -bound, bound)
        b = jax.random.uniform(kb, (1, fan_out), jnp.float32, -bound, bound)
        return w, b

    w1, b1 = linear(ks[0], ks[1], num_global_state_features, hidden_dim1)
    w2, b2 = linear(ks[2], ks[3], hidden_dim1, hidden_dim2)
    w3, b3 = linear(ks[4], ks[5], hidden_dim2, 1)
    return {"w1": w1, "b1": b1, "w2": w2, "b2": b2, "w3": w3, "b3": b3}


def value_network_ref(x, params):
    if x.ndim == 1:
        x = x[None, :]
    h1 = jnp.maximum(x @ params["w1"] + params["b1"], 0.0)
    h2 = jnp.maximum(h1 @ params["w2"] + params["b2"], 0.0)
    return h2 @ params["w3"] + params["b3"]


if __name__ == "__main__":
    key = jax.random.PRNGKey(0)
    k_params, k_x1, k_x2 = jax.random.split(key, 3)

    num_features = 16
    params = init_params(k_params, num_features)

    # Primary small-shape check (f32, single tile, partial input block of 2 rows).
    x = jax.random.normal(k_x1, (2, num_features), dtype=jnp.float32)
    value = value_network_forward(x, params)
    jax.block_until_ready(value)
    ref = value_network_ref(x, params)
    assert value.shape == (2, 1)
    assert jnp.allclose(value, ref, atol=1e-4, rtol=1e-4), "f32 mismatch vs reference"

    # 1-D input path (PyTorch unsqueeze behaviour).
    v1 = value_network_forward(x[0], params)
    jax.block_until_ready(v1)
    assert v1.shape == (1, 1)
    assert jnp.allclose(v1, ref[0:1], atol=1e-4, rtol=1e-4), "1-D path mismatch"

    # Ragged batch in one bucketed tile (exercises block-boundary clipping, no pad copy).
    xb = jax.random.normal(k_x2, (300, num_features), dtype=jnp.float32)
    refb = value_network_ref(xb, params)
    vb = value_network_forward(xb, params)
    jax.block_until_ready(vb)
    assert vb.shape == (300, 1)
    assert jnp.allclose(vb, refb, atol=1e-4, rtol=1e-4), "single-tile ragged mismatch"

    # Multi-tile grid with a ragged last tile (exercises index maps + pipelining).
    vb_small = value_network_forward(xb, params, max_tile_b=128)
    jax.block_until_ready(vb_small)
    assert vb_small.shape == (300, 1)
    assert jnp.allclose(vb_small, refb, atol=1e-4, rtol=1e-4), "multi-tile mismatch"

    # bf16 MXU fast path (x supplied in bf16 so the dominant HBM read of x is halved).
    vbf = value_network_forward(xb.astype(jnp.bfloat16), params,
                                max_tile_b=128, compute_dtype=jnp.bfloat16)
    jax.block_until_ready(vbf)
    assert vbf.shape == (300, 1)
    assert jnp.allclose(vbf, refb, atol=5e-2, rtol=5e-2), "bf16 path mismatch"

    print("KERNEL_OK")
</pallas_src>

<mosaic_0001>
module attributes {stable_mosaic.version = 11 : i64} {
  func.func @kernel(%arg0: i32, %arg1: memref<128x16xf32, #tpu.memory_space<vmem>>, %arg2: memref<16x64xf32, #tpu.memory_space<vmem>>, %arg3: memref<1x64xf32, #tpu.memory_space<vmem>>, %arg4: memref<64x32xf32, #tpu.memory_space<vmem>>, %arg5: memref<1x32xf32, #tpu.memory_space<vmem>>, %arg6: memref<1x32xf32, #tpu.memory_space<vmem>>, %arg7: memref<1x1xf32, #tpu.memory_space<smem>>, %arg8: memref<1x128xf32, #tpu.memory_space<vmem>>) attributes {dimension_semantics = [#tpu.dimension_semantics<parallel>], iteration_bounds = array<i64: 1>, scalar_prefetch = 0 : i64, scratch_operands = 0 : i64, tpu.core_type = #tpu.core_type<tc>, window_params = [{transform_indices = @transform_0, window_bounds = array<i64: 128, 16>}, {pipeline_mode = #tpu.pipeline_mode<synchronous>, transform_indices = @transform_1, window_bounds = array<i64: 16, 64>}, {pipeline_mode = #tpu.pipeline_mode<synchronous>, transform_indices = @transform_2, window_bounds = array<i64: 1, 64>}, {pipeline_mode = #tpu.pipeline_mode<synchronous>, transform_indices = @transform_3, window_bounds = array<i64: 64, 32>}, {pipeline_mode = #tpu.pipeline_mode<synchronous>, transform_indices = @transform_4, window_bounds = array<i64: 1, 32>}, {pipeline_mode = #tpu.pipeline_mode<synchronous>, transform_indices = @transform_5, window_bounds = array<i64: 1, 32>}, {transform_indices = @transform_6, window_bounds = array<i64: 1, 1>}, {transform_indices = @transform_7, window_bounds = array<i64: 1, 128>}]} {
    %c0 = arith.constant 0 : index
    %c0_0 = arith.constant 0 : index
    %0 = vector.load %arg2[%c0, %c0_0] : memref<16x64xf32, #tpu.memory_space<vmem>>, vector<16x64xf32>
    %c0_1 = arith.constant 0 : index
    %c0_2 = arith.constant 0 : index
    %1 = vector.load %arg4[%c0_1, %c0_2] : memref<64x32xf32, #tpu.memory_space<vmem>>, vector<64x32xf32>
    %c0_3 = arith.constant 0 : index
    %c0_4 = arith.constant 0 : index
    %2 = vector.load %arg3[%c0_3, %c0_4] : memref<1x64xf32, #tpu.memory_space<vmem>>, vector<1x64xf32>
    %c0_5 = arith.constant 0 : index
    %c0_6 = arith.constant 0 : index
    %3 = vector.load %arg5[%c0_5, %c0_6] : memref<1x32xf32, #tpu.memory_space<vmem>>, vector<1x32xf32>
    %c0_7 = arith.constant 0 : index
    %c0_8 = arith.constant 0 : index
    %4 = vector.load %arg6[%c0_7, %c0_8] : memref<1x32xf32, #tpu.memory_space<vmem>>, vector<1x32xf32>
    %c0_9 = arith.constant 0 : index
    %c0_10 = arith.constant 0 : index
    %5 = memref.load %arg7[%c0_9, %c0_10] : memref<1x1xf32, #tpu.memory_space<smem>>
    %c0_i32 = arith.constant 0 : i32
    %6 = tpu.assume_multiple %c0_i32, 128 : i32
    %7 = arith.index_cast %6 : i32 to index
    %c0_11 = arith.constant 0 : index
    %8 = vector.load %arg1[%7, %c0_11] : memref<128x16xf32, #tpu.memory_space<vmem>>, vector<128x16xf32>
    %cst = arith.constant dense<0.000000e+00> : vector<128x64xf32>
    %9 = tpu.matmul %8, %0, %cst {dimension_numbers = #tpu.dot_dimension_numbers<[1], [0], [0], [1], [0, 0, 1, 1], [], []>} : vector<128x16xf32>, vector<16x64xf32>, vector<128x64xf32> -> vector<128x64xf32>
    %10 = vector.broadcast %2 : vector<1x64xf32> to vector<128x64xf32>
    %11 = arith.addf %9, %10 : vector<128x64xf32>
    %cst_12 = arith.constant 0.000000e+00 : f32
    %12 = vector.broadcast %cst_12 : f32 to vector<128x64xf32>
    %13 = arith.maximumf %11, %12 : vector<128x64xf32>
    %cst_13 = arith.constant dense<0.000000e+00> : vector<128x32xf32>
    %14 = tpu.matmul %13, %1, %cst_13 {dimension_numbers = #tpu.dot_dimension_numbers<[1], [0], [0], [1], [0, 0, 1, 1], [], []>} : vector<128x64xf32>, vector<64x32xf32>, vector<128x32xf32> -> vector<128x32xf32>
    %15 = vector.broadcast %3 : vector<1x32xf32> to vector<128x32xf32>
    %16 = arith.addf %14, %15 : vector<128x32xf32>
    %cst_14 = arith.constant 0.000000e+00 : f32
    %17 = vector.broadcast %cst_14 : f32 to vector<128x32xf32>
    %18 = arith.maximumf %16, %17 : vector<128x32xf32>
    %19 = vector.broadcast %4 : vector<1x32xf32> to vector<128x32xf32>
    %20 = arith.mulf %18, %19 : vector<128x32xf32>
    %cst_15 = arith.constant dense<0.000000e+00> : vector<128xf32>
    %21 = vector.multi_reduction <add>, %20, %cst_15 [1] : vector<128x32xf32> to vector<128xf32>
    %22 = vector.broadcast %5 : f32 to vector<128xf32>
    %23 = arith.addf %21, %22 : vector<128xf32>
    %24 = vector.shape_cast %23 : vector<128xf32> to vector<1x128xf32>
    %c0_16 = arith.constant 0 : index
    %25 = arith.index_cast %6 : i32 to index
    %26 = vector.load %arg8[%c0_16, %25] : memref<1x128xf32, #tpu.memory_space<vmem>>, vector<1x128xf32>
    tpu.vector_store %arg8[%c0_16, %25], %24 {strides = array<i32>} : memref<1x128xf32, #tpu.memory_space<vmem>>, vector<1x128xf32>,
    return
  }
  func.func @transform_0(%arg0: i32) -> (i32, i32) {
    %c0_i32 = arith.constant 0 : i32
    %c0_i32_0 = arith.constant 0 : i32
    return %arg0, %c0_i32 : i32, i32
  }
  func.func @transform_1(%arg0: i32) -> (i32, i32) {
    %c0_i32 = arith.constant 0 : i32
    %c0_i32_0 = arith.constant 0 : i32
    %c0_i32_1 = arith.constant 0 : i32
    return %c0_i32, %c0_i32_0 : i32, i32
  }
  func.func @transform_2(%arg0: i32) -> (i32, i32) {
    %c0_i32 = arith.constant 0 : i32
    %c0_i32_0 = arith.constant 0 : i32
    %c0_i32_1 = arith.constant 0 : i32
    return %c0_i32, %c0_i32_0 : i32, i32
  }
  func.func @transform_3(%arg0: i32) -> (i32, i32) {
    %c0_i32 = arith.constant 0 : i32
    %c0_i32_0 = arith.constant 0 : i32
    %c0_i32_1 = arith.constant 0 : i32
    return %c0_i32, %c0_i32_0 : i32, i32
  }
  func.func @transform_4(%arg0: i32) -> (i32, i32) {
    %c0_i32 = arith.constant 0 : i32
    %c0_i32_0 = arith.constant 0 : i32
    %c0_i32_1 = arith.constant 0 : i32
    return %c0_i32, %c0_i32_0 : i32, i32
  }
  func.func @transform_5(%arg0: i32) -> (i32, i32) {
    %c0_i32 = arith.constant 0 : i32
    %c0_i32_0 = arith.constant 0 : i32
    %c0_i32_1 = arith.constant 0 : i32
    return %c0_i32, %c0_i32_0 : i32, i32
  }
  func.func @transform_6(%arg0: i32) -> (i32, i32) {
    %c0_i32 = arith.constant 0 : i32
    %c0_i32_0 = arith.constant 0 : i32
    %c0_i32_1 = arith.constant 0 : i32
    return %c0_i32, %c0_i32_0 : i32, i32
  }
  func.func @transform_7(%arg0: i32) -> (i32, i32) {
    %c0_i32 = arith.constant 0 : i32
    %c0_i32_0 = arith.constant 0 : i32
    return %arg0, %c0_i32 : i32, i32
  }
}

</mosaic_0001>

<llo_original>
// kernel: tpu_custom_call.1
$region0: #{tpu_custom_call.1}
  #allocation0 [shape = 'u32[]', space=smem, size = 0x4, offset = 0x4, fixed_abs, tag = 'smem constant byte address 0x4 - core index']
  #allocation1 [shape = 'u32[144,128]{1,0:T(1,128)}', space=vmem, size = 0x12000, scoped, tag = 'internal scratch']
  #allocation2 [shape = 'f32[1,1]{1,0:T(1,128)S(6)}', space=smem, size = 0x200, scoped, tag = 'scoped memory for tpu_custom_call.1']
  %s0 = inlined_call_operand.vmem [shape: f32[2,16], index: 0, kind: input, shape index: {}]
  %s1 = inlined_call_operand.vmem [shape: f32[16,64], index: 1, kind: input, shape index: {}]
  %s2 = inlined_call_operand.vmem [shape: f32[1,64], index: 2, kind: input, shape index: {}]
  %s3 = inlined_call_operand.vmem [shape: f32[64,32], index: 3, kind: input, shape index: {}]
  %s4 = inlined_call_operand.vmem [shape: f32[1,32], index: 4, kind: input, shape index: {}]
  %s5 = inlined_call_operand.vmem [shape: f32[1,32], index: 5, kind: input, shape index: {}]
  %s6 = inlined_call_operand.<no memory space> [shape: f32[1,1], index: 6, kind: input, shape index: {}]
  %s7 = inlined_call_operand.hbm [shape: f32[1,128], index: 7, kind: output, shape index: {}]
  %s8 = sld [smem:[#allocation0]]
  $region38: #{tpu_custom_call.1} parent=0
    _
  %s10 = ssub.s32 1, %s8
  %s11 = scalar_select 0, %s10, %s8
  %12 = sst [smem:[#allocation2]] %s6
  $region1: #{tpu_custom_call.1} parent=0
    #allocation3 [shape = 'u8[512]{0}', space=vmem, size = 0x400, scoped, tag = 'output window, operand 0, single buffered']
    #allocation4 [shape = 's32[1]{0}', space=sflag, size = 0x4, scoped, tag = 'scoped memory for tpu_custom_call.1']
    %13 = vsyncpa [#allocation4], 0
    // Predicated region
    $region2: #{tpu_custom_call.1} parent=1 // pred_check
      _
    $region3: #{tpu_custom_call.1} parent=1 // pred_check_branch
      %15 = sbr.rel (0) target = $region5
    $region4: #{tpu_custom_call.1} parent=1 // pred_region
      _
    $region5: #{tpu_custom_call.1} parent=1 // pred_fallthru
      _
    // Predicated region
    $region6: #{tpu_custom_call.1} parent=1 // pred_check
      _
    $region7: #{tpu_custom_call.1} parent=1 // pred_check_branch
      %17 = sbr.rel (0) target = $region9
    $region8: #{tpu_custom_call.1} parent=1 // pred_region
      _
    $region9: #{tpu_custom_call.1} parent=1 // pred_fallthru
      _
    // Predicated region
    $region10: #{tpu_custom_call.1} parent=1 // pred_check
      _
    $region11: #{tpu_custom_call.1} parent=1 // pred_check_branch
      %19 = sbr.rel (0) target = $region13
    $region12: #{tpu_custom_call.1} parent=1 // pred_region
      _
    $region13: #{tpu_custom_call.1} parent=1 // pred_fallthru
      _
    // Predicated region
    $region14: #{tpu_custom_call.1} parent=1 // pred_check
      _
    $region15: #{tpu_custom_call.1} parent=1 // pred_check_branch
      %21 = sbr.rel (0) target = $region17
    $region16: #{tpu_custom_call.1} parent=1 // pred_region
      _
    $region17: #{tpu_custom_call.1} parent=1 // pred_fallthru
      _
    // Predicated region
    $region18: #{tpu_custom_call.1} parent=1 // pred_check
      _
    $region19: #{tpu_custom_call.1} parent=1 // pred_check_branch
      %23 = sbr.rel (0) target = $region21
    $region20: #{tpu_custom_call.1} parent=1 // pred_region
      _
    $region21: #{tpu_custom_call.1} parent=1 // pred_fallthru
      _
    // Predicated region
    $region22: #{tpu_custom_call.1} parent=1 // pred_check
      _
    $region23: #{tpu_custom_call.1} parent=1 // pred_check_branch
      %25 = sbr.rel (0) target = $region25
    $region24: #{tpu_custom_call.1} parent=1 // pred_region
      _
    $region25: #{tpu_custom_call.1} parent=1 // pred_fallthru
      _
    // Predicated region
    $region26: #{tpu_custom_call.1} parent=1 // pred_check
      _
    $region27: #{tpu_custom_call.1} parent=1 // pred_check_branch
      %27 = sbr.rel (0) target = $region29
    $region28: #{tpu_custom_call.1} parent=1 // pred_region
      _
    $region29: #{tpu_custom_call.1} parent=1 // pred_fallthru
      _
    %v28 = vld [vmem:[%s1] sm:$0xff]
    %v29 = vld [vmem:[%s1 + $0x8] sm:$0xff]
    %v30 = vld [vmem:[%s3] sm:$0xff]
    %v31 = vld [vmem:[%s3 + $0x8] sm:$0xff]
    %v32 = vld [vmem:[%s3 + $0x10] sm:$0xff]
    %v33 = vld [vmem:[%s3 + $0x18] sm:$0xff]
    %v34 = vld [vmem:[%s3 + $0x20] sm:$0xff]
    %v35 = vld [vmem:[%s3 + $0x28] sm:$0xff]
    %v36 = vld [vmem:[%s3 + $0x30] sm:$0xff]
    %v37 = vld [vmem:[%s3 + $0x38] sm:$0xff]
    %v38 = vld [vmem:[%s2] sm:$0x1]
    %v39 = vld [vmem:[%s4] sm:$0x1]
    %v40 = vld [vmem:[%s5] sm:$0x1]
    %s41 = sld [smem:[#allocation2]]
    %v42 = vld [vmem:[%s0] sm:$0xff]
    %v43 = vld [vmem:[%s0 + $0x8] sm:$0xff]
    %v44 = vld [vmem:[%s0 + $0x10] sm:$0xff]
    %v45 = vld [vmem:[%s0 + $0x18] sm:$0xff]
    %v46 = vld [vmem:[%s0 + $0x20] sm:$0xff]
    %v47 = vld [vmem:[%s0 + $0x28] sm:$0xff]
    %v48 = vld [vmem:[%s0 + $0x30] sm:$0xff]
    %v49 = vld [vmem:[%s0 + $0x38] sm:$0xff]
    %v50 = vld [vmem:[%s0 + $0x40] sm:$0xff]
    %v51 = vld [vmem:[%s0 + $0x48] sm:$0xff]
    %v52 = vld [vmem:[%s0 + $0x50] sm:$0xff]
    %v53 = vld [vmem:[%s0 + $0x58] sm:$0xff]
    %v54 = vld [vmem:[%s0 + $0x60] sm:$0xff]
    %v55 = vld [vmem:[%s0 + $0x68] sm:$0xff]
    %v56 = vld [vmem:[%s0 + $0x70] sm:$0xff]
    %v57 = vld [vmem:[%s0 + $0x78] sm:$0xff]
    %v59 = vlaneseq
    %v60 = vshrl.u32 %v59, 7
    %v61 = vsub.s32 0, %v60
    %v62 = vrot.slane %v38, %v61
    %vm64 = vcmask 130048
    %v66 = vsel %vm64, %v42, 0
    %v69 = vsel %vm64, %v43, 0
    %v72 = vsel %vm64, %v44, 0
    %v75 = vsel %vm64, %v45, 0
    %v78 = vsel %vm64, %v46, 0
    %v81 = vsel %vm64, %v47, 0
    %v84 = vsel %vm64, %v48, 0
    %v87 = vsel %vm64, %v49, 0
    %v90 = vsel %vm64, %v50, 0
    %v93 = vsel %vm64, %v51, 0
    %v96 = vsel %vm64, %v52, 0
    %v99 = vsel %vm64, %v53, 0
    %v102 = vsel %vm64, %v54, 0
    %v105 = vsel %vm64, %v55, 0
    %v108 = vsel %vm64, %v56, 0
    %v111 = vsel %vm64, %v57, 0
    %113 = vmatprep.subr.mxu0 0.0
    %114 = vmatpush1.msra.mxu0 0.0
    %115 = vmatprep.subr.mxu0 0.0
    %116 = vmatpush1.msra.mxu0 0.0
    %117 = vmatprep.subr.mxu0 0.0
    %118 = vmatpush1.msra.mxu0 0.0
    %119 = vmatprep.subr.mxu0 0.0
    %120 = vmatpush1.msra.mxu0 0.0
    %121 = vmatprep.subr.mxu0 0.0
    %122 = vmatpush1.msra.mxu0 0.0
    %123 = vmatprep.subr.mxu0 0.0
    %124 = vmatpush1.msra.mxu0 0.0
    %125 = vmatprep.subr.mxu0 0.0
    %126 = vmatpush1.msra.mxu0 0.0
    %127 = vmatprep.subr.mxu0 0.0
    %128 = vmatpush1.msra.mxu0 0.0
    %129 = vmatprep.subr.mxu0 0.0
    %130 = vmatpush1.msra.mxu0 0.0
    %131 = vmatprep.subr.mxu0 0.0
    %132 = vmatpush1.msra.mxu0 0.0
    %133 = vmatprep.subr.mxu0 0.0
    %134 = vmatpush1.msra.mxu0 0.0
    %135 = vmatprep.subr.mxu0 0.0
    %136 = vmatpush1.msra.mxu0 0.0
    %137 = vmatprep.subr.mxu0 0.0
    %138 = vmatpush1.msra.mxu0 0.0
    %139 = vmatprep.subr.mxu0 0.0
    %140 = vmatpush1.msra.mxu0 0.0
    %141 = vmatprep.subr.mxu0 0.0
    %142 = vmatpush1.msra.mxu0 %v29
    %143 = vmatprep.subr.mxu0 0.0
    %144 = vmatpush1.msra.mxu0 %v28
    %145 = vmatprep.subr.mxu0 0.0
    %146 = vmatpush2.msra.mxu0 0.0
    %147 = vmatprep.subr.mxu0 0.0
    %148 = vmatpush2.msra.mxu0 0.0
    %149 = vmatprep.subr.mxu0 0.0
    %150 = vmatpush2.msra.mxu0 0.0
    %151 = vmatprep.subr.mxu0 0.0
    %152 = vmatpush2.msra.mxu0 0.0
    %153 = vmatprep.subr.mxu0 0.0
    %154 = vmatpush2.msra.mxu0 0.0
    %155 = vmatprep.subr.mxu0 0.0
    %156 = vmatpush2.msra.mxu0 0.0
    %157 = vmatprep.subr.mxu0 0.0
    %158 = vmatpush2.msra.mxu0 0.0
    %159 = vmatprep.subr.mxu0 0.0
    %160 = vmatpush2.msra.mxu0 0.0
    %161 = vmatprep.subr.mxu0 0.0
    %162 = vmatpush2.msra.mxu0 0.0
    %163 = vmatprep.subr.mxu0 0.0
    %164 = vmatpush2.msra.mxu0 0.0
    %165 = vmatprep.subr.mxu0 0.0
    %166 = vmatpush2.msra.mxu0 0.0
    %167 = vmatprep.subr.mxu0 0.0
    %168 = vmatpush2.msra.mxu0 0.0
    %169 = vmatprep.subr.mxu0 0.0
    %170 = vmatpush2.msra.mxu0 0.0
    %171 = vmatprep.subr.mxu0 0.0
    %172 = vmatpush2.msra.mxu0 0.0
    %173 = vmatprep.subr.mxu0 0.0
    %174 = vmatpush2.msra.mxu0 0.0
    %175 = vmatprep.subr.mxu0 0.0
    %176 = vmatpush2.msra.mxu0 0.0
    %177 = vmatprep.mubr.f32.mxu0 0.0
    %178 = vmatmul.mubr.f32.gmra.mxu0 %v66
    %v179 = vpop.f32.mrf.mxu0
    %v180 = vadd.f32 %v62, %v179
    %v181 = vpop.f32.mrf.mxu0
    %182 = vmatprep.mubr.f32.mxu0 0.0
    %183 = vmatmul.mubr.f32.gmra.mxu0 %v69
    %v184 = vpop.f32.mrf.mxu0
    %v185 = vadd.f32 %v62, %v184
    %v186 = vpop.f32.mrf.mxu0
    %187 = vmatprep.mubr.f32.mxu0 0.0
    %188 = vmatmul.mubr.f32.gmra.mxu0 %v72
    %v189 = vpop.f32.mrf.mxu0
    %v190 = vadd.f32 %v62, %v189
    %v191 = vpop.f32.mrf.mxu0
    %192 = vmatprep.mubr.f32.mxu0 0.0
    %193 = vmatmul.mubr.f32.gmra.mxu0 %v75
    %v194 = vpop.f32.mrf.mxu0
    %v195 = vadd.f32 %v62, %v194
    %v196 = vpop.f32.mrf.mxu0
    %197 = vmatprep.mubr.f32.mxu0 0.0
    %198 = vmatmul.mubr.f32.gmra.mxu0 %v78
    %v199 = vpop.f32.mrf.mxu0
    %v200 = vadd.f32 %v62, %v199
    %v201 = vpop.f32.mrf.mxu0
    %202 = vmatprep.mubr.f32.mxu0 0.0
    %203 = vmatmul.mubr.f32.gmra.mxu0 %v81
    %v204 = vpop.f32.mrf.mxu0
    %v205 = vadd.f32 %v62, %v204
    %v206 = vpop.f32.mrf.mxu0
    %207 = vmatprep.mubr.f32.mxu0 0.0
    %208 = vmatmul.mubr.f32.gmra.mxu0 %v84
    %v209 = vpop.f32.mrf.mxu0
    %v210 = vadd.f32 %v62, %v209
    %v211 = vpop.f32.mrf.mxu0
    %212 = vmatprep.mubr.f32.mxu0 0.0
    %213 = vmatmul.mubr.f32.gmra.mxu0 %v87
    %v214 = vpop.f32.mrf.mxu0
    %v215 = vadd.f32 %v62, %v214
    %v216 = vpop.f32.mrf.mxu0
    %217 = vmatprep.mubr.f32.mxu0 0.0
    %218 = vmatmul.mubr.f32.gmra.mxu0 %v90
    %v219 = vpop.f32.mrf.mxu0
    %v220 = vadd.f32 %v62, %v219
    %v221 = vpop.f32.mrf.mxu0
    %222 = vmatprep.mubr.f32.mxu0 0.0
    %223 = vmatmul.mubr.f32.gmra.mxu0 %v93
    %v224 = vpop.f32.mrf.mxu0
    %v225 = vadd.f32 %v62, %v224
    %v226 = vpop.f32.mrf.mxu0
    %227 = vmatprep.mubr.f32.mxu0 0.0
    %228 = vmatmul.mubr.f32.gmra.mxu0 %v96
    %v229 = vpop.f32.mrf.mxu0
    %v230 = vadd.f32 %v62, %v229
    %v231 = vpop.f32.mrf.mxu0
    %232 = vmatprep.mubr.f32.mxu0 0.0
    %233 = vmatmul.mubr.f32.gmra.mxu0 %v99
    %v234 = vpop.f32.mrf.mxu0
    %v235 = vadd.f32 %v62, %v234
    %v236 = vpop.f32.mrf.mxu0
    %237 = vmatprep.mubr.f32.mxu0 0.0
    %238 = vmatmul.mubr.f32.gmra.mxu0 %v102
    %v239 = vpop.f32.mrf.mxu0
    %v240 = vadd.f32 %v62, %v239
    %v241 = vpop.f32.mrf.mxu0
    %242 = vmatprep.mubr.f32.mxu0 0.0
    %243 = vmatmul.mubr.f32.gmra.mxu0 %v105
    %v244 = vpop.f32.mrf.mxu0
    %v245 = vadd.f32 %v62, %v244
    %v246 = vpop.f32.mrf.mxu0
    %247 = vmatprep.mubr.f32.mxu0 0.0
    %248 = vmatmul.mubr.f32.gmra.mxu0 %v108
    %v249 = vpop.f32.mrf.mxu0
    %v250 = vadd.f32 %v62, %v249
    %v251 = vpop.f32.mrf.mxu0
    %252 = vmatprep.mubr.f32.mxu0 0.0
    %253 = vmatmul.mubr.f32.gmra.mxu0 %v111
    %v254 = vpop.f32.mrf.mxu0
    %v255 = vadd.f32 %v62, %v254
    %v256 = vpop.f32.mrf.mxu0
    %257 = vdwg.mxu0
    %v258 = vmax.f32 %v180, 0.0
    %v259 = vmax.f32 %v185, 0.0
    %v260 = vmax.f32 %v190, 0.0
    %v261 = vmax.f32 %v195, 0.0
    %v262 = vmax.f32 %v200, 0.0
    %v263 = vmax.f32 %v205, 0.0
    %v264 = vmax.f32 %v210, 0.0
    %v265 = vmax.f32 %v215, 0.0
    %v266 = vmax.f32 %v220, 0.0
    %v267 = vmax.f32 %v225, 0.0
    %v268 = vmax.f32 %v230, 0.0
    %v269 = vmax.f32 %v235, 0.0
    %v270 = vmax.f32 %v240, 0.0
    %v271 = vmax.f32 %v245, 0.0
    %v272 = vmax.f32 %v250, 0.0
    %v273 = vmax.f32 %v255, 0.0
    %v275 = vlaneseq
    %v276 = vshrl.u32 %v275, 7
    %v277 = vsub.s32 0, %v276
    %v278 = vrot.slane %v39, %v277
    %vm280 = vcmask 523264
    %v282 = vsel %vm280, %v258, 0
    %v285 = vsel %vm280, %v259, 0
    %v288 = vsel %vm280, %v260, 0
    %v291 = vsel %vm280, %v261, 0
    %v294 = vsel %vm280, %v262, 0
    %v297 = vsel %vm280, %v263, 0
    %v300 = vsel %vm280, %v264, 0
    %v303 = vsel %vm280, %v265, 0
    %v306 = vsel %vm280, %v266, 0
    %v309 = vsel %vm280, %v267, 0
    %v312 = vsel %vm280, %v268, 0
    %v315 = vsel %vm280, %v269, 0
    %v318 = vsel %vm280, %v270, 0
    %v321 = vsel %vm280, %v271, 0
    %v324 = vsel %vm280, %v272, 0
    %v327 = vsel %vm280, %v273, 0
    %329 = vmatprep.subr.mxu0 0.0
    %330 = vmatpush1.msra.mxu0 0.0
    %331 = vmatprep.subr.mxu0 0.0
    %332 = vmatpush1.msra.mxu0 0.0
    %333 = vmatprep.subr.mxu0 0.0
    %334 = vmatpush1.msra.mxu0 0.0
    %335 = vmatprep.subr.mxu0 0.0
    %336 = vmatpush1.msra.mxu0 0.0
    %337 = vmatprep.subr.mxu0 0.0
    %338 = vmatpush1.msra.mxu0 0.0
    %339 = vmatprep.subr.mxu0 0.0
    %340 = vmatpush1.msra.mxu0 0.0
    %341 = vmatprep.subr.mxu0 0.0
    %342 = vmatpush1.msra.mxu0 0.0
    %343 = vmatprep.subr.mxu0 0.0
    %344 = vmatpush1.msra.mxu0 0.0
    %345 = vmatprep.subr.mxu0 0.0
    %346 = vmatpush1.msra.mxu0 %v37
    %347 = vmatprep.subr.mxu0 0.0
    %348 = vmatpush1.msra.mxu0 %v36
    %349 = vmatprep.subr.mxu0 0.0
    %350 = vmatpush1.msra.mxu0 %v35
    %351 = vmatprep.subr.mxu0 0.0
    %352 = vmatpush1.msra.mxu0 %v34
    %353 = vmatprep.subr.mxu0 0.0
    %354 = vmatpush1.msra.mxu0 %v33
    %355 = vmatprep.subr.mxu0 0.0
    %356 = vmatpush1.msra.mxu0 %v32
    %357 = vmatprep.subr.mxu0 0.0
    %358 = vmatpush1.msra.mxu0 %v31
    %359 = vmatprep.subr.mxu0 0.0
    %360 = vmatpush1.msra.mxu0 %v30
    %361 = vmatprep.subr.mxu0 0.0
    %362 = vmatpush2.msra.mxu0 0.0
    %363 = vmatprep.subr.mxu0 0.0
    %364 = vmatpush2.msra.mxu0 0.0
    %365 = vmatprep.subr.mxu0 0.0
    %366 = vmatpush2.msra.mxu0 0.0
    %367 = vmatprep.subr.mxu0 0.0
    %368 = vmatpush2.msra.mxu0 0.0
    %369 = vmatprep.subr.mxu0 0.0
    %370 = vmatpush2.msra.mxu0 0.0
    %371 = vmatprep.subr.mxu0 0.0
    %372 = vmatpush2.msra.mxu0 0.0
    %373 = vmatprep.subr.mxu0 0.0
    %374 = vmatpush2.msra.mxu0 0.0
    %375 = vmatprep.subr.mxu0 0.0
    %376 = vmatpush2.msra.mxu0 0.0
    %377 = vmatprep.subr.mxu0 0.0
    %378 = vmatpush2.msra.mxu0 0.0
    %379 = vmatprep.subr.mxu0 0.0
    %380 = vmatpush2.msra.mxu0 0.0
    %381 = vmatprep.subr.mxu0 0.0
    %382 = vmatpush2.msra.mxu0 0.0
    %383 = vmatprep.subr.mxu0 0.0
    %384 = vmatpush2.msra.mxu0 0.0
    %385 = vmatprep.subr.mxu0 0.0
    %386 = vmatpush2.msra.mxu0 0.0
    %387 = vmatprep.subr.mxu0 0.0
    %388 = vmatpush2.msra.mxu0 0.0
    %389 = vmatprep.subr.mxu0 0.0
    %390 = vmatpush2.msra.mxu0 0.0
    %391 = vmatprep.subr.mxu0 0.0
    %392 = vmatpush2.msra.mxu0 0.0
    %393 = vmatprep.mubr.f32.mxu0 0.0
    %394 = vmatmul.mubr.f32.gmra.mxu0 %v282
    %v395 = vpop.f32.mrf.mxu0
    %v396 = vadd.f32 %v278, %v395
    %v397 = vpop.f32.mrf.mxu0
    %398 = vmatprep.mubr.f32.mxu0 0.0
    %399 = vmatmul.mubr.f32.gmra.mxu0 %v285
    %v400 = vpop.f32.mrf.mxu0
    %v401 = vadd.f32 %v278, %v400
    %v402 = vpop.f32.mrf.mxu0
    %403 = vmatprep.mubr.f32.mxu0 0.0
    %404 = vmatmul.mubr.f32.gmra.mxu0 %v288
    %v405 = vpop.f32.mrf.mxu0
    %v406 = vadd.f32 %v278, %v405
    %v407 = vpop.f32.mrf.mxu0
    %408 = vmatprep.mubr.f32.mxu0 0.0
    %409 = vmatmul.mubr.f32.gmra.mxu0 %v291
    %v410 = vpop.f32.mrf.mxu0
    %v411 = vadd.f32 %v278, %v410
    %v412 = vpop.f32.mrf.mxu0
    %413 = vmatprep.mubr.f32.mxu0 0.0
    %414 = vmatmul.mubr.f32.gmra.mxu0 %v294
    %v415 = vpop.f32.mrf.mxu0
    %v416 = vadd.f32 %v278, %v415
    %v417 = vpop.f32.mrf.mxu0
    %418 = vmatprep.mubr.f32.mxu0 0.0
    %419 = vmatmul.mubr.f32.gmra.mxu0 %v297
    %v420 = vpop.f32.mrf.mxu0
    %v421 = vadd.f32 %v278, %v420
    %v422 = vpop.f32.mrf.mxu0
    %423 = vmatprep.mubr.f32.mxu0 0.0
    %424 = vmatmul.mubr.f32.gmra.mxu0 %v300
    %v425 = vpop.f32.mrf.mxu0
    %v426 = vadd.f32 %v278, %v425
    %v427 = vpop.f32.mrf.mxu0
    %428 = vmatprep.mubr.f32.mxu0 0.0
    %429 = vmatmul.mubr.f32.gmra.mxu0 %v303
    %v430 = vpop.f32.mrf.mxu0
    %v431 = vadd.f32 %v278, %v430
    %v432 = vpop.f32.mrf.mxu0
    %433 = vmatprep.mubr.f32.mxu0 0.0
    %434 = vmatmul.mubr.f32.gmra.mxu0 %v306
    %v435 = vpop.f32.mrf.mxu0
    %v436 = vadd.f32 %v278, %v435
    %v437 = vpop.f32.mrf.mxu0
    %438 = vmatprep.mubr.f32.mxu0 0.0
    %439 = vmatmul.mubr.f32.gmra.mxu0 %v309
    %v440 = vpop.f32.mrf.mxu0
    %v441 = vadd.f32 %v278, %v440
    %v442 = vpop.f32.mrf.mxu0
    %443 = vmatprep.mubr.f32.mxu0 0.0
    %444 = vmatmul.mubr.f32.gmra.mxu0 %v312
    %v445 = vpop.f32.mrf.mxu0
    %v446 = vadd.f32 %v278, %v445
    %v447 = vpop.f32.mrf.mxu0
    %448 = vmatprep.mubr.f32.mxu0 0.0
    %449 = vmatmul.mubr.f32.gmra.mxu0 %v315
    %v450 = vpop.f32.mrf.mxu0
    %v451 = vadd.f32 %v278, %v450
    %v452 = vpop.f32.mrf.mxu0
    %453 = vmatprep.mubr.f32.mxu0 0.0
    %454 = vmatmul.mubr.f32.gmra.mxu0 %v318
    %v455 = vpop.f32.mrf.mxu0
    %v456 = vadd.f32 %v278, %v455
    %v457 = vpop.f32.mrf.mxu0
    %458 = vmatprep.mubr.f32.mxu0 0.0
    %459 = vmatmul.mubr.f32.gmra.mxu0 %v321
    %v460 = vpop.f32.mrf.mxu0
    %v461 = vadd.f32 %v278, %v460
    %v462 = vpop.f32.mrf.mxu0
    %463 = vmatprep.mubr.f32.mxu0 0.0
    %464 = vmatmul.mubr.f32.gmra.mxu0 %v324
    %v465 = vpop.f32.mrf.mxu0
    %v466 = vadd.f32 %v278, %v465
    %v467 = vpop.f32.mrf.mxu0
    %468 = vmatprep.mubr.f32.mxu0 0.0
    %469 = vmatmul.mubr.f32.gmra.mxu0 %v327
    %v470 = vpop.f32.mrf.mxu0
    %v471 = vadd.f32 %v278, %v470
    %v472 = vpop.f32.mrf.mxu0
    %473 = vdwg.mxu0
    %v474 = vmax.f32 %v396, 0.0
    %v475 = vmax.f32 %v401, 0.0
    %v476 = vmax.f32 %v406, 0.0
    %v477 = vmax.f32 %v411, 0.0
    %v478 = vmax.f32 %v416, 0.0
    %v479 = vmax.f32 %v421, 0.0
    %v480 = vmax.f32 %v426, 0.0
    %v481 = vmax.f32 %v431, 0.0
    %v482 = vmax.f32 %v436, 0.0
    %v483 = vmax.f32 %v441, 0.0
    %v484 = vmax.f32 %v446, 0.0
    %v485 = vmax.f32 %v451, 0.0
    %v486 = vmax.f32 %v456, 0.0
    %v487 = vmax.f32 %v461, 0.0
    %v488 = vmax.f32 %v466, 0.0
    %v489 = vmax.f32 %v471, 0.0
    %v491 = vlaneseq
    %v492 = vshrl.u32 %v491, 7
    %v493 = vsub.s32 0, %v492
    %v494 = vrot.slane %v40, %v493
    %v496 = vmul.f32 %v474, %v494
    %v497 = vmul.f32 %v475, %v494
    %v498 = vmul.f32 %v476, %v494
    %v499 = vmul.f32 %v477, %v494
    %v500 = vmul.f32 %v478, %v494
    %v501 = vmul.f32 %v479, %v494
    %v502 = vmul.f32 %v480, %v494
    %v503 = vmul.f32 %v481, %v494
    %v504 = vmul.f32 %v482, %v494
    %v505 = vmul.f32 %v483, %v494
    %v506 = vmul.f32 %v484, %v494
    %v507 = vmul.f32 %v485, %v494
    %v508 = vmul.f32 %v486, %v494
    %v509 = vmul.f32 %v487, %v494
    %v510 = vmul.f32 %v488, %v494
    %v511 = vmul.f32 %v489, %v494
    %vm512 = vcmask 261120
    %v513 = vsel %vm512, %v496, 0.0
    %514 = vadd.xlane.f32.xlu0 %v513
    %v515 = vpop.xlane.xlu0 %514
    %v516 = vsel %vm512, %v497, 0.0
    %517 = vadd.xlane.f32.xlu0 %v516
    %v518 = vpop.xlane.xlu0 %517
    %v519 = vsel %vm512, %v498, 0.0
    %520 = vadd.xlane.f32.xlu0 %v519
    %v521 = vpop.xlane.xlu0 %520
    %v522 = vsel %vm512, %v499, 0.0
    %523 = vadd.xlane.f32.xlu0 %v522
    %v524 = vpop.xlane.xlu0 %523
    %v525 = vsel %vm512, %v500, 0.0
    %526 = vadd.xlane.f32.xlu0 %v525
    %v527 = vpop.xlane.xlu0 %526
    %v528 = vsel %vm512, %v501, 0.0
    %529 = vadd.xlane.f32.xlu0 %v528
    %v530 = vpop.xlane.xlu0 %529
    %v531 = vsel %vm512, %v502, 0.0
    %532 = vadd.xlane.f32.xlu0 %v531
    %v533 = vpop.xlane.xlu0 %532
    %v534 = vsel %vm512, %v503, 0.0
    %535 = vadd.xlane.f32.xlu0 %v534
    %v536 = vpop.xlane.xlu0 %535
    %v537 = vsel %vm512, %v504, 0.0
    %538 = vadd.xlane.f32.xlu0 %v537
    %v539 = vpop.xlane.xlu0 %538
    %v540 = vsel %vm512, %v505, 0.0
    %541 = vadd.xlane.f32.xlu0 %v540
    %v542 = vpop.xlane.xlu0 %541
    %v543 = vsel %vm512, %v506, 0.0
    %544 = vadd.xlane.f32.xlu0 %v543
    %v545 = vpop.xlane.xlu0 %544
    %v546 = vsel %vm512, %v507, 0.0
    %547 = vadd.xlane.f32.xlu0 %v546
    %v548 = vpop.xlane.xlu0 %547
    %v549 = vsel %vm512, %v508, 0.0
    %550 = vadd.xlane.f32.xlu0 %v549
    %v551 = vpop.xlane.xlu0 %550
    %v552 = vsel %vm512, %v509, 0.0
    %553 = vadd.xlane.f32.xlu0 %v552
    %v554 = vpop.xlane.xlu0 %553
    %v555 = vsel %vm512, %v510, 0.0
    %556 = vadd.xlane.f32.xlu0 %v555
    %v557 = vpop.xlane.xlu0 %556
    %v558 = vsel %vm512, %v511, 0.0
    %559 = vadd.xlane.f32.xlu0 %v558
    %v560 = vpop.xlane.xlu0 %559
    %v561 = vstv %s41
    %v562 = vadd.f32 %v515, %v561
    %v563 = vadd.f32 %v518, %v561
    %v564 = vadd.f32 %v521, %v561
    %v565 = vadd.f32 %v524, %v561
    %v566 = vadd.f32 %v527, %v561
    %v567 = vadd.f32 %v530, %v561
    %v568 = vadd.f32 %v533, %v561
    %v569 = vadd.f32 %v536, %v561
    %v570 = vadd.f32 %v539, %v561
    %v571 = vadd.f32 %v542, %v561
    %v572 = vadd.f32 %v545, %v561
    %v573 = vadd.f32 %v548, %v561
    %v574 = vadd.f32 %v551, %v561
    %v575 = vadd.f32 %v554, %v561
    %v576 = vadd.f32 %v557, %v561
    %v577 = vadd.f32 %v560, %v561
    %v594 = vlaneseq
    %v595 = vand.u32 %v594, 127
    %v596 = vlaneseq
    %v597 = vshrl.u32 %v596, 7
    %v598 = vsub.s32 %v595, %v597
    %v599 = vrot.slane %v562, %v598
    %v600 = vadd.s32 %v595, 4294967288
    %v601 = vlaneseq
    %v602 = vshrl.u32 %v601, 7
    %v603 = vsub.s32 %v600, %v602
    %v604 = vrot.slane %v563, %v603
    %vm605 = vcmask 130112
    %v606 = vsel %vm605, %v604, %v599
    %v607 = vadd.s32 %v595, 4294967280
    %v608 = vlaneseq
    %v609 = vshrl.u32 %v608, 7
    %v610 = vsub.s32 %v607, %v609
    %v611 = vrot.slane %v564, %v610
    %vm612 = vcmask 195712
    %v613 = vsel %vm612, %v611, %v606
    %v614 = vadd.s32 %v595, 4294967272
    %v615 = vlaneseq
    %v616 = vshrl.u32 %v615, 7
    %v617 = vsub.s32 %v614, %v616
    %v618 = vrot.slane %v565, %v617
    %vm619 = vcmask 261312
    %v620 = vsel %vm619, %v618, %v613
    %v621 = vadd.s32 %v595, 4294967264
    %v622 = vlaneseq
    %v623 = vshrl.u32 %v622, 7
    %v624 = vsub.s32 %v621, %v623
    %v625 = vrot.slane %v566, %v624
    %vm626 = vcmask 326912
    %v627 = vsel %vm626, %v625, %v620
    %v628 = vadd.s32 %v595, 4294967256
    %v629 = vlaneseq
    %v630 = vshrl.u32 %v629, 7
    %v631 = vsub.s32 %v628, %v630
    %v632 = vrot.slane %v567, %v631
    %vm633 = vcmask 392512
    %v634 = vsel %vm633, %v632, %v627
    %v635 = vadd.s32 %v595, 4294967248
    %v636 = vlaneseq
    %v637 = vshrl.u32 %v636, 7
    %v638 = vsub.s32 %v635, %v637
    %v639 = vrot.slane %v568, %v638
    %vm640 = vcmask 458112
    %v641 = vsel %vm640, %v639, %v634
    %v642 = vadd.s32 %v595, 4294967240
    %v643 = vlaneseq
    %v644 = vshrl.u32 %v643, 7
    %v645 = vsub.s32 %v642, %v644
    %v646 = vrot.slane %v569, %v645
    %vm647 = vcmask 523712
    %v648 = vsel %vm647, %v646, %v641
    %v649 = vadd.s32 %v595, 4294967232
    %v650 = vlaneseq
    %v651 = vshrl.u32 %v650, 7
    %v652 = vsub.s32 %v649, %v651
    %v653 = vrot.slane %v570, %v652
    %vm654 = vcmask 589312
    %v655 = vsel %vm654, %v653, %v648
    %v656 = vadd.s32 %v595, 4294967224
    %v657 = vlaneseq
    %v658 = vshrl.u32 %v657, 7
    %v659 = vsub.s32 %v656, %v658
    %v660 = vrot.slane %v571, %v659
    %vm661 = vcmask 654912
    %v662 = vsel %vm661, %v660, %v655
    %v663 = vadd.s32 %v595, 4294967216
    %v664 = vlaneseq
    %v665 = vshrl.u32 %v664, 7
    %v666 = vsub.s32 %v663, %v665
    %v667 = vrot.slane %v572, %v666
    %vm668 = vcmask 720512
    %v669 = vsel %vm668, %v667, %v662
    %v670 = vadd.s32 %v595, 4294967208
    %v671 = vlaneseq
    %v672 = vshrl.u32 %v671, 7
    %v673 = vsub.s32 %v670, %v672
    %v674 = vrot.slane %v573, %v673
    %vm675 = vcmask 786112
    %v676 = vsel %vm675, %v674, %v669
    %v677 = vadd.s32 %v595, 4294967200
    %v678 = vlaneseq
    %v679 = vshrl.u32 %v678, 7
    %v680 = vsub.s32 %v677, %v679
    %v681 = vrot.slane %v574, %v680
    %vm682 = vcmask 851712
    %v683 = vsel %vm682, %v681, %v676
    %v684 = vadd.s32 %v595, 4294967192
    %v685 = vlaneseq
    %v686 = vshrl.u32 %v685, 7
    %v687 = vsub.s32 %v684, %v686
    %v688 = vrot.slane %v575, %v687
    %vm689 = vcmask 917312
    %v690 = vsel %vm689, %v688, %v683
    %v691 = vadd.s32 %v595, 4294967184
    %v692 = vlaneseq
    %v693 = vshrl.u32 %v692, 7
    %v694 = vsub.s32 %v691, %v693
    %v695 = vrot.slane %v576, %v694
    %vm696 = vcmask 982912
    %v697 = vsel %vm696, %v695, %v690
    %v698 = vadd.s32 %v595, 4294967176
    %v699 = vlaneseq
    %v700 = vshrl.u32 %v699, 7
    %v701 = vsub.s32 %v698, %v700
    %v702 = vrot.slane %v577, %v701
    %vm703 = vcmask 1048512
    %v704 = vsel %vm703, %v702, %v697
    %706 = vst [vmem:[#allocation3] sm:$0x1] %v704
    // Predicated region
    $region30: #{tpu_custom_call.1} parent=1 // pred_check
      _
    $region31: #{tpu_custom_call.1} parent=1 // pred_check_branch
      %708 = sbr.rel (0) target = $region33
    $region32: #{tpu_custom_call.1} parent=1 // pred_region
      %s710 = ssub.s32 16, 16
      %711 = vsyncadd [#allocation4], %s710
      %s713 = sshll.u32 [#allocation3], 4
      %s714 = int_to_ptr.vmem [resolvable:$true] %s713
      %716 = dma.vmem_to_hbm [thread:$0]  %s714, 16, %s7, [#allocation4]
    $region33: #{tpu_custom_call.1} parent=1 // pred_fallthru
      _
    // Predicated region
    $region34: #{tpu_custom_call.1} parent=1 // pred_check
      _
    $region35: #{tpu_custom_call.1} parent=1 // pred_check_branch
      %718 = sbr.rel (0) target = $region37
    $region36: #{tpu_custom_call.1} parent=1 // pred_region
      %719 = dma.done [#allocation4], 16
    $region37: #{tpu_custom_call.1} parent=1 // pred_fallthru
      _
    %720 = vsyncpa [#allocation4], 1

</llo_original>
